<compile_context>
chip_gen: v7x
topology: tpu7x:2x2x1
jax: 0.10.0
libtpu: 0.0.40
codegen_flags: <defaults>
</compile_context>

<pallas_src>
from functools import partial

import jax
import jax.numpy as jnp
from jax import lax
from jax.experimental import pallas as pl
from jax.experimental.pallas import tpu as pltpu

INPUT_SIZE = 10
HIDDEN_SIZE = 20
OUTPUT_SIZE = 2

LANE = 128     # vreg lane width
SUBLANE = 8    # vreg sublane count


def _round_up(n, m):
    return ((n + m - 1) // m) * m


def lstm_fc_kernel(x_ref, w_ih_ref, w_hh_ref, b_ref, w_fc_ref, b_fc_ref,
                   out_ref, h_ref, *, hidden):
    """Whole LSTM recurrence + final FC in a single kernel invocation.

    x_ref    : (T*BP, IP)  bf16  time-major, flattened, feature-padded input
    w_ih_ref : (IP, GP)    bf16  packed-gate input weights  (cols [0,4H) real)
    w_hh_ref : (GP, GP)    bf16  packed-gate recurrent weights (rows >= H zero)
    b_ref    : (1, GP)     f32   combined b_ih + b_hh, packed-gate layout
    w_fc_ref : (GP, OP)    f32   FC weights (rows >= H zero)
    b_fc_ref : (1, OP)     f32   FC bias
    out_ref  : (BP, OP)    f32   lane-dense padded output
    h_ref    : (BP, GP)    f32   scratch hidden state; lanes >= H stay zero
    """
    TB, _ = x_ref.shape
    GP = w_hh_ref.shape[1]
    BP = out_ref.shape[0]
    T = TB // BP
    H = hidden

    # Hoisted input projection: ONE bf16 MXU matmul for all T timesteps
    # (f32 accumulation), bias broadcast once. 8 vregs -> register-resident,
    # no VMEM scratch round-trip.
    xg = jnp.dot(x_ref[...], w_ih_ref[...],
                 preferred_element_type=jnp.float32) + b_ref[...]   # (T*BP, GP)

    w_hh = w_hh_ref[...]                       # bf16 (GP, GP), rows >= H are 0

    # h kept in a zero-initialized scratch: only lanes [0, H) are ever written,
    # so the matmul LHS stays a fully aligned (BP, GP) tile with inert padding.
    h_ref[...] = jnp.zeros_like(h_ref)
    c = jnp.zeros((BP, H), jnp.float32)

    # TODO(synk): hold w_hh weight-stationary on the MXU across the steps via
    # pltpu.matmul_push_rhs / matmul_acc_lhs / matmul_pop (8-row LHS per step).
    for t in range(T):                         # fully unrolled static time loop
        xg_t = xg[t * BP:(t + 1) * BP, :]      # static sublane-aligned slice
        h_bf16 = h_ref[...].astype(jnp.bfloat16)
        # Only this narrow (BP,GP)x(GP,GP) bf16 dot remains on the serial chain.
        gates = xg_t + jnp.dot(h_bf16, w_hh,
                               preferred_element_type=jnp.float32)   # (BP, GP)
        # One sigmoid + one tanh over the packed gates vreg (EUP), then static
        # lane slices (XLU rotates) to extract each H-wide gate. f32 throughout.
        sg = jax.nn.sigmoid(gates)
        tg = jnp.tanh(gates)
        i_g = sg[:, 0 * H:1 * H]
        f_g = sg[:, 1 * H:2 * H]
        g_g = tg[:, 2 * H:3 * H]
        o_g = sg[:, 3 * H:4 * H]
        c = f_g * c + i_g * g_g
        h_ref[:, :H] = o_g * jnp.tanh(c)       # masked store; lanes >= H stay 0

    # Final FC on the last hidden state (once, f32); lane-dense (BP, OP) store.
    out_ref[...] = (
        jnp.dot(h_ref[...], w_fc_ref[...], preferred_element_type=jnp.float32)
        + b_fc_ref[...]
    )


def simple_lstm_forward(x, params):
    """x: (B, T, I) batch-first, like the PyTorch module. Returns (B, O) f32."""
    B, T, I = x.shape
    H = params["w_hh"].shape[0]
    O = params["w_fc"].shape[1]

    GP = _round_up(4 * H, LANE)   # packed gates: one 128-lane block
    assert GP == LANE, "gate packing assumes 4 * hidden_size <= 128"
    IP = _round_up(I, LANE)       # lane-aligned input features
    OP = _round_up(O, LANE)       # lane-dense output store
    BP = _round_up(B, SUBLANE)    # sublane-aligned batch

    # Time-major, batch+feature padded, flattened to one aligned MXU operand.
    # bf16 cast here is MXU-operand-only; the kernel accumulates in f32.
    x_tm = jnp.transpose(x, (1, 0, 2)).astype(jnp.float32)           # (T, B, I)
    x_p = jnp.zeros((T, BP, IP), jnp.float32).at[:, :B, :I].set(x_tm)
    x2d = x_p.reshape(T * BP, IP).astype(jnp.bfloat16)               # (T*BP, IP)

    # Packed gate layout: [i|f|g|o] contiguous in lanes [0, 4H). Lanes >= 4H and
    # rows >= H (w_hh, w_fc) / >= I (w_ih) are zero -> padding provably inert.
    w_ih_p = (jnp.zeros((IP, GP), jnp.float32)
              .at[:I, :4 * H].set(params["w_ih"]).astype(jnp.bfloat16))
    w_hh_p = (jnp.zeros((GP, GP), jnp.float32)
              .at[:H, :4 * H].set(params["w_hh"]).astype(jnp.bfloat16))
    b_p = (jnp.zeros((1, GP), jnp.float32)
           .at[0, :4 * H].set(params["b_ih"] + params["b_hh"]))
    w_fc_p = jnp.zeros((GP, OP), jnp.float32).at[:H, :O].set(params["w_fc"])
    b_fc_p = jnp.zeros((1, OP), jnp.float32).at[0, :O].set(params["b_fc"])

    vmem = pl.BlockSpec(memory_space=pltpu.MemorySpace.VMEM)
    out_p = pl.pallas_call(
        partial(lstm_fc_kernel, hidden=H),
        out_shape=jax.ShapeDtypeStruct((BP, OP), jnp.float32),
        in_specs=[vmem] * 6,
        out_specs=vmem,
        scratch_shapes=[pltpu.VMEM((BP, GP), jnp.float32)],   # h state
    )(x2d, w_ih_p, w_hh_p, b_p, w_fc_p, b_fc_p)
    # TODO(synk): for large B, add a batch grid (grid=(BP//8,)) with
    # dimension_semantics=("parallel",) so v7x's two TensorCores split the work;
    # at B=2 a grid is pure per-step overhead.
    # TODO(synk): for long sequences, tile T via BlockSpec / pltpu.emit_pipeline
    # instead of keeping all of x resident in VMEM.
    return out_p[:B, :O]


def init_params(key, input_size, hidden_size, output_size):
    """Deterministic parameter init (uniform, PyTorch-like fan-in scaling).
    Stored pre-transposed for right-multiplication: w_ih (I,4H), w_hh (H,4H)."""
    k = 1.0 / jnp.sqrt(hidden_size)
    keys = jax.random.split(key, 6)
    w_ih = jax.random.uniform(keys[0], (input_size, 4 * hidden_size),
                              jnp.float32, -k, k)
    w_hh = jax.random.uniform(keys[1], (hidden_size, 4 * hidden_size),
                              jnp.float32, -k, k)
    b_ih = jax.random.uniform(keys[2], (4 * hidden_size,), jnp.float32, -k, k)
    b_hh = jax.random.uniform(keys[3], (4 * hidden_size,), jnp.float32, -k, k)
    w_fc = jax.random.uniform(keys[4], (hidden_size, output_size),
                              jnp.float32, -k, k)
    b_fc = jax.random.uniform(keys[5], (output_size,), jnp.float32, -k, k)
    return {"w_ih": w_ih, "w_hh": w_hh, "b_ih": b_ih, "b_hh": b_hh,
            "w_fc": w_fc, "b_fc": b_fc}


def reference_forward(x, params):
    """Pure-JAX f32 reference of the same LSTM + FC (unpadded) for verification."""
    B, T, I = x.shape
    H = params["w_hh"].shape[0]
    bias = params["b_ih"] + params["b_hh"]

    def step(carry, x_t):
        h, c = carry
        gates = x_t @ params["w_ih"] + h @ params["w_hh"] + bias
        i_g = jax.nn.sigmoid(gates[:, 0 * H:1 * H])
        f_g = jax.nn.sigmoid(gates[:, 1 * H:2 * H])
        g_g = jnp.tanh(gates[:, 2 * H:3 * H])
        o_g = jax.nn.sigmoid(gates[:, 3 * H:4 * H])
        c = f_g * c + i_g * g_g
        h = o_g * jnp.tanh(c)
        return (h, c), None

    h0 = jnp.zeros((B, H), jnp.float32)
    c0 = jnp.zeros((B, H), jnp.float32)
    (h_last, _), _ = lax.scan(step, (h0, c0), jnp.transpose(x, (1, 0, 2)))
    return h_last @ params["w_fc"] + params["b_fc"]


if __name__ == "__main__":
    key = jax.random.PRNGKey(0)
    k_param, k_x = jax.random.split(key)

    B, T = 2, 8
    params = init_params(k_param, INPUT_SIZE, HIDDEN_SIZE, OUTPUT_SIZE)
    x = jax.random.normal(k_x, (B, T, INPUT_SIZE), jnp.float32)

    out = simple_lstm_forward(x, params)
    out = jax.block_until_ready(out)

    ref = reference_forward(x, params)
    assert out.shape == (B, OUTPUT_SIZE)
    # Tolerance relaxed vs. the pure-f32 version: MXU operands are bf16
    # (f32 accumulation), per the perf review.
    assert jnp.allclose(out, ref, atol=3e-2, rtol=3e-2), (out, ref)

    print("KERNEL_OK")
</pallas_src>

<mosaic_0001>
module attributes {stable_mosaic.version = 11 : i64} {
  func.func @lstm_fc_kernel(%arg0: memref<64x128xbf16, #tpu.memory_space<vmem>>, %arg1: memref<128x128xbf16, #tpu.memory_space<vmem>>, %arg2: memref<128x128xbf16, #tpu.memory_space<vmem>>, %arg3: memref<1x128xf32, #tpu.memory_space<vmem>>, %arg4: memref<128x128xf32, #tpu.memory_space<vmem>>, %arg5: memref<1x128xf32, #tpu.memory_space<vmem>>, %arg6: memref<8x128xf32, #tpu.memory_space<vmem>>, %arg7: memref<8x128xf32, #tpu.memory_space<vmem>>) attributes {dimension_semantics = [], scalar_prefetch = 0 : i64, scratch_operands = 1 : i64, tpu.core_type = #tpu.core_type<tc>} {
    %c0 = arith.constant 0 : index
    %c0_0 = arith.constant 0 : index
    %0 = vector.load %arg0[%c0, %c0_0] : memref<64x128xbf16, #tpu.memory_space<vmem>>, vector<64x128xbf16>
    %c0_1 = arith.constant 0 : index
    %c0_2 = arith.constant 0 : index
    %1 = vector.load %arg1[%c0_1, %c0_2] : memref<128x128xbf16, #tpu.memory_space<vmem>>, vector<128x128xbf16>
    %cst = arith.constant dense<0.000000e+00> : vector<64x128xf32>
    %2 = tpu.matmul %0, %1, %cst {dimension_numbers = #tpu.dot_dimension_numbers<[1], [0], [0], [1], [0, 0, 1, 1], [], []>} : vector<64x128xbf16>, vector<128x128xbf16>, vector<64x128xf32> -> vector<64x128xf32>
    %c0_3 = arith.constant 0 : index
    %c0_4 = arith.constant 0 : index
    %3 = vector.load %arg3[%c0_3, %c0_4] : memref<1x128xf32, #tpu.memory_space<vmem>>, vector<1x128xf32>
    %4 = vector.broadcast %3 : vector<1x128xf32> to vector<64x128xf32>
    %5 = arith.addf %2, %4 : vector<64x128xf32>
    %c0_5 = arith.constant 0 : index
    %c0_6 = arith.constant 0 : index
    %6 = vector.load %arg2[%c0_5, %c0_6] : memref<128x128xbf16, #tpu.memory_space<vmem>>, vector<128x128xbf16>
    %cst_7 = arith.constant 0.000000e+00 : f32
    %7 = vector.broadcast %cst_7 : f32 to vector<8x128xf32>
    %c0_8 = arith.constant 0 : index
    %c0_9 = arith.constant 0 : index
    %8 = vector.load %arg7[%c0_8, %c0_9] : memref<8x128xf32, #tpu.memory_space<vmem>>, vector<8x128xf32>
    tpu.vector_store %arg7[%c0_8, %c0_9], %7 {strides = array<i32>} : memref<8x128xf32, #tpu.memory_space<vmem>>, vector<8x128xf32>,
    %cst_10 = arith.constant 0.000000e+00 : f32
    %9 = vector.broadcast %cst_10 : f32 to vector<8x20xf32>
    %10 = vector.extract_strided_slice %5 {offsets = [0, 0], sizes = [8, 128], strides = [1, 1]} : vector<64x128xf32> to vector<8x128xf32>
    %c0_11 = arith.constant 0 : index
    %c0_12 = arith.constant 0 : index
    %11 = vector.load %arg7[%c0_11, %c0_12] : memref<8x128xf32, #tpu.memory_space<vmem>>, vector<8x128xf32>
    %12 = arith.truncf %11 : vector<8x128xf32> to vector<8x128xbf16>
    %cst_13 = arith.constant dense<0.000000e+00> : vector<8x128xf32>
    %13 = tpu.matmul %12, %6, %cst_13 {dimension_numbers = #tpu.dot_dimension_numbers<[1], [0], [0], [1], [0, 0, 1, 1], [], []>} : vector<8x128xbf16>, vector<128x128xbf16>, vector<8x128xf32> -> vector<8x128xf32>
    %14 = arith.addf %10, %13 : vector<8x128xf32>
    %15 = arith.negf %14 : vector<8x128xf32>
    %16 = math.exp %15 : vector<8x128xf32>
    %cst_14 = arith.constant 1.000000e+00 : f32
    %17 = vector.broadcast %cst_14 : f32 to vector<8x128xf32>
    %18 = arith.addf %17, %16 : vector<8x128xf32>
    %19 = arith.divf %17, %18 : vector<8x128xf32>
    %20 = math.tanh %14 : vector<8x128xf32>
    %21 = vector.extract_strided_slice %19 {offsets = [0, 0], sizes = [8, 20], strides = [1, 1]} : vector<8x128xf32> to vector<8x20xf32>
    %22 = vector.extract_strided_slice %19 {offsets = [0, 20], sizes = [8, 20], strides = [1, 1]} : vector<8x128xf32> to vector<8x20xf32>
    %23 = vector.extract_strided_slice %20 {offsets = [0, 40], sizes = [8, 20], strides = [1, 1]} : vector<8x128xf32> to vector<8x20xf32>
    %24 = vector.extract_strided_slice %19 {offsets = [0, 60], sizes = [8, 20], strides = [1, 1]} : vector<8x128xf32> to vector<8x20xf32>
    %25 = arith.mulf %22, %9 : vector<8x20xf32>
    %26 = arith.mulf %21, %23 : vector<8x20xf32>
    %27 = arith.addf %25, %26 : vector<8x20xf32>
    %28 = math.tanh %27 : vector<8x20xf32>
    %29 = arith.mulf %24, %28 : vector<8x20xf32>
    %c0_15 = arith.constant 0 : index
    %c0_16 = arith.constant 0 : index
    %30 = vector.load %arg7[%c0_15, %c0_16] : memref<8x128xf32, #tpu.memory_space<vmem>>, vector<8x20xf32>
    tpu.vector_store %arg7[%c0_15, %c0_16], %29 {strides = array<i32>} : memref<8x128xf32, #tpu.memory_space<vmem>>, vector<8x20xf32>,
    %31 = vector.extract_strided_slice %5 {offsets = [8, 0], sizes = [8, 128], strides = [1, 1]} : vector<64x128xf32> to vector<8x128xf32>
    %c0_17 = arith.constant 0 : index
    %c0_18 = arith.constant 0 : index
    %32 = vector.load %arg7[%c0_17, %c0_18] : memref<8x128xf32, #tpu.memory_space<vmem>>, vector<8x128xf32>
    %33 = arith.truncf %32 : vector<8x128xf32> to vector<8x128xbf16>
    %cst_19 = arith.constant dense<0.000000e+00> : vector<8x128xf32>
    %34 = tpu.matmul %33, %6, %cst_19 {dimension_numbers = #tpu.dot_dimension_numbers<[1], [0], [0], [1], [0, 0, 1, 1], [], []>} : vector<8x128xbf16>, vector<128x128xbf16>, vector<8x128xf32> -> vector<8x128xf32>
    %35 = arith.addf %31, %34 : vector<8x128xf32>
    %36 = arith.negf %35 : vector<8x128xf32>
    %37 = math.exp %36 : vector<8x128xf32>
    %cst_20 = arith.constant 1.000000e+00 : f32
    %38 = vector.broadcast %cst_20 : f32 to vector<8x128xf32>
    %39 = arith.addf %38, %37 : vector<8x128xf32>
    %40 = arith.divf %38, %39 : vector<8x128xf32>
    %41 = math.tanh %35 : vector<8x128xf32>
    %42 = vector.extract_strided_slice %40 {offsets = [0, 0], sizes = [8, 20], strides = [1, 1]} : vector<8x128xf32> to vector<8x20xf32>
    %43 = vector.extract_strided_slice %40 {offsets = [0, 20], sizes = [8, 20], strides = [1, 1]} : vector<8x128xf32> to vector<8x20xf32>
    %44 = vector.extract_strided_slice %41 {offsets = [0, 40], sizes = [8, 20], strides = [1, 1]} : vector<8x128xf32> to vector<8x20xf32>
    %45 = vector.extract_strided_slice %40 {offsets = [0, 60], sizes = [8, 20], strides = [1, 1]} : vector<8x128xf32> to vector<8x20xf32>
    %46 = arith.mulf %43, %27 : vector<8x20xf32>
    %47 = arith.mulf %42, %44 : vector<8x20xf32>
    %48 = arith.addf %46, %47 : vector<8x20xf32>
    %49 = math.tanh %48 : vector<8x20xf32>
    %50 = arith.mulf %45, %49 : vector<8x20xf32>
    %c0_21 = arith.constant 0 : index
    %c0_22 = arith.constant 0 : index
    %51 = vector.load %arg7[%c0_21, %c0_22] : memref<8x128xf32, #tpu.memory_space<vmem>>, vector<8x20xf32>
    tpu.vector_store %arg7[%c0_21, %c0_22], %50 {strides = array<i32>} : memref<8x128xf32, #tpu.memory_space<vmem>>, vector<8x20xf32>,
    %52 = vector.extract_strided_slice %5 {offsets = [16, 0], sizes = [8, 128], strides = [1, 1]} : vector<64x128xf32> to vector<8x128xf32>
    %c0_23 = arith.constant 0 : index
    %c0_24 = arith.constant 0 : index
    %53 = vector.load %arg7[%c0_23, %c0_24] : memref<8x128xf32, #tpu.memory_space<vmem>>, vector<8x128xf32>
    %54 = arith.truncf %53 : vector<8x128xf32> to vector<8x128xbf16>
    %cst_25 = arith.constant dense<0.000000e+00> : vector<8x128xf32>
    %55 = tpu.matmul %54, %6, %cst_25 {dimension_numbers = #tpu.dot_dimension_numbers<[1], [0], [0], [1], [0, 0, 1, 1], [], []>} : vector<8x128xbf16>, vector<128x128xbf16>, vector<8x128xf32> -> vector<8x128xf32>
    %56 = arith.addf %52, %55 : vector<8x128xf32>
    %57 = arith.negf %56 : vector<8x128xf32>
    %58 = math.exp %57 : vector<8x128xf32>
    %cst_26 = arith.constant 1.000000e+00 : f32
    %59 = vector.broadcast %cst_26 : f32 to vector<8x128xf32>
    %60 = arith.addf %59, %58 : vector<8x128xf32>
    %61 = arith.divf %59, %60 : vector<8x128xf32>
    %62 = math.tanh %56 : vector<8x128xf32>
    %63 = vector.extract_strided_slice %61 {offsets = [0, 0], sizes = [8, 20], strides = [1, 1]} : vector<8x128xf32> to vector<8x20xf32>
    %64 = vector.extract_strided_slice %61 {offsets = [0, 20], sizes = [8, 20], strides = [1, 1]} : vector<8x128xf32> to vector<8x20xf32>
    %65 = vector.extract_strided_slice %62 {offsets = [0, 40], sizes = [8, 20], strides = [1, 1]} : vector<8x128xf32> to vector<8x20xf32>
    %66 = vector.extract_strided_slice %61 {offsets = [0, 60], sizes = [8, 20], strides = [1, 1]} : vector<8x128xf32> to vector<8x20xf32>
    %67 = arith.mulf %64, %48 : vector<8x20xf32>
    %68 = arith.mulf %63, %65 : vector<8x20xf32>
    %69 = arith.addf %67, %68 : vector<8x20xf32>
    %70 = math.tanh %69 : vector<8x20xf32>
    %71 = arith.mulf %66, %70 : vector<8x20xf32>
    %c0_27 = arith.constant 0 : index
    %c0_28 = arith.constant 0 : index
    %72 = vector.load %arg7[%c0_27, %c0_28] : memref<8x128xf32, #tpu.memory_space<vmem>>, vector<8x20xf32>
    tpu.vector_store %arg7[%c0_27, %c0_28], %71 {strides = array<i32>} : memref<8x128xf32, #tpu.memory_space<vmem>>, vector<8x20xf32>,
    %73 = vector.extract_strided_slice %5 {offsets = [24, 0], sizes = [8, 128], strides = [1, 1]} : vector<64x128xf32> to vector<8x128xf32>
    %c0_29 = arith.constant 0 : index
    %c0_30 = arith.constant 0 : index
    %74 = vector.load %arg7[%c0_29, %c0_30] : memref<8x128xf32, #tpu.memory_space<vmem>>, vector<8x128xf32>
    %75 = arith.truncf %74 : vector<8x128xf32> to vector<8x128xbf16>
    %cst_31 = arith.constant dense<0.000000e+00> : vector<8x128xf32>
    %76 = tpu.matmul %75, %6, %cst_31 {dimension_numbers = #tpu.dot_dimension_numbers<[1], [0], [0], [1], [0, 0, 1, 1], [], []>} : vector<8x128xbf16>, vector<128x128xbf16>, vector<8x128xf32> -> vector<8x128xf32>
    %77 = arith.addf %73, %76 : vector<8x128xf32>
    %78 = arith.negf %77 : vector<8x128xf32>
    %79 = math.exp %78 : vector<8x128xf32>
    %cst_32 = arith.constant 1.000000e+00 : f32
    %80 = vector.broadcast %cst_32 : f32 to vector<8x128xf32>
    %81 = arith.addf %80, %79 : vector<8x128xf32>
    %82 = arith.divf %80, %81 : vector<8x128xf32>
    %83 = math.tanh %77 : vector<8x128xf32>
    %84 = vector.extract_strided_slice %82 {offsets = [0, 0], sizes = [8, 20], strides = [1, 1]} : vector<8x128xf32> to vector<8x20xf32>
    %85 = vector.extract_strided_slice %82 {offsets = [0, 20], sizes = [8, 20], strides = [1, 1]} : vector<8x128xf32> to vector<8x20xf32>
    %86 = vector.extract_strided_slice %83 {offsets = [0, 40], sizes = [8, 20], strides = [1, 1]} : vector<8x128xf32> to vector<8x20xf32>
    %87 = vector.extract_strided_slice %82 {offsets = [0, 60], sizes = [8, 20], strides = [1, 1]} : vector<8x128xf32> to vector<8x20xf32>
    %88 = arith.mulf %85, %69 : vector<8x20xf32>
    %89 = arith.mulf %84, %86 : vector<8x20xf32>
    %90 = arith.addf %88, %89 : vector<8x20xf32>
    %91 = math.tanh %90 : vector<8x20xf32>
    %92 = arith.mulf %87, %91 : vector<8x20xf32>
    %c0_33 = arith.constant 0 : index
    %c0_34 = arith.constant 0 : index
    %93 = vector.load %arg7[%c0_33, %c0_34] : memref<8x128xf32, #tpu.memory_space<vmem>>, vector<8x20xf32>
    tpu.vector_store %arg7[%c0_33, %c0_34], %92 {strides = array<i32>} : memref<8x128xf32, #tpu.memory_space<vmem>>, vector<8x20xf32>,
    %94 = vector.extract_strided_slice %5 {offsets = [32, 0], sizes = [8, 128], strides = [1, 1]} : vector<64x128xf32> to vector<8x128xf32>
    %c0_35 = arith.constant 0 : index
    %c0_36 = arith.constant 0 : index
    %95 = vector.load %arg7[%c0_35, %c0_36] : memref<8x128xf32, #tpu.memory_space<vmem>>, vector<8x128xf32>
    %96 = arith.truncf %95 : vector<8x128xf32> to vector<8x128xbf16>
    %cst_37 = arith.constant dense<0.000000e+00> : vector<8x128xf32>
    %97 = tpu.matmul %96, %6, %cst_37 {dimension_numbers = #tpu.dot_dimension_numbers<[1], [0], [0], [1], [0, 0, 1, 1], [], []>} : vector<8x128xbf16>, vector<128x128xbf16>, vector<8x128xf32> -> vector<8x128xf32>
    %98 = arith.addf %94, %97 : vector<8x128xf32>
    %99 = arith.negf %98 : vector<8x128xf32>
    %100 = math.exp %99 : vector<8x128xf32>
    %cst_38 = arith.constant 1.000000e+00 : f32
    %101 = vector.broadcast %cst_38 : f32 to vector<8x128xf32>
    %102 = arith.addf %101, %100 : vector<8x128xf32>
    %103 = arith.divf %101, %102 : vector<8x128xf32>
    %104 = math.tanh %98 : vector<8x128xf32>
    %105 = vector.extract_strided_slice %103 {offsets = [0, 0], sizes = [8, 20], strides = [1, 1]} : vector<8x128xf32> to vector<8x20xf32>
    %106 = vector.extract_strided_slice %103 {offsets = [0, 20], sizes = [8, 20], strides = [1, 1]} : vector<8x128xf32> to vector<8x20xf32>
    %107 = vector.extract_strided_slice %104 {offsets = [0, 40], sizes = [8, 20], strides = [1, 1]} : vector<8x128xf32> to vector<8x20xf32>
    %108 = vector.extract_strided_slice %103 {offsets = [0, 60], sizes = [8, 20], strides = [1, 1]} : vector<8x128xf32> to vector<8x20xf32>
    %109 = arith.mulf %106, %90 : vector<8x20xf32>
    %110 = arith.mulf %105, %107 : vector<8x20xf32>
    %111 = arith.addf %109, %110 : vector<8x20xf32>
    %112 = math.tanh %111 : vector<8x20xf32>
    %113 = arith.mulf %108, %112 : vector<8x20xf32>
    %c0_39 = arith.constant 0 : index
    %c0_40 = arith.constant 0 : index
    %114 = vector.load %arg7[%c0_39, %c0_40] : memref<8x128xf32, #tpu.memory_space<vmem>>, vector<8x20xf32>
    tpu.vector_store %arg7[%c0_39, %c0_40], %113 {strides = array<i32>} : memref<8x128xf32, #tpu.memory_space<vmem>>, vector<8x20xf32>,
    %115 = vector.extract_strided_slice %5 {offsets = [40, 0], sizes = [8, 128], strides = [1, 1]} : vector<64x128xf32> to vector<8x128xf32>
    %c0_41 = arith.constant 0 : index
    %c0_42 = arith.constant 0 : index
    %116 = vector.load %arg7[%c0_41, %c0_42] : memref<8x128xf32, #tpu.memory_space<vmem>>, vector<8x128xf32>
    %117 = arith.truncf %116 : vector<8x128xf32> to vector<8x128xbf16>
    %cst_43 = arith.constant dense<0.000000e+00> : vector<8x128xf32>
    %118 = tpu.matmul %117, %6, %cst_43 {dimension_numbers = #tpu.dot_dimension_numbers<[1], [0], [0], [1], [0, 0, 1, 1], [], []>} : vector<8x128xbf16>, vector<128x128xbf16>, vector<8x128xf32> -> vector<8x128xf32>
    %119 = arith.addf %115, %118 : vector<8x128xf32>
    %120 = arith.negf %119 : vector<8x128xf32>
    %121 = math.exp %120 : vector<8x128xf32>
    %cst_44 = arith.constant 1.000000e+00 : f32
    %122 = vector.broadcast %cst_44 : f32 to vector<8x128xf32>
    %123 = arith.addf %122, %121 : vector<8x128xf32>
    %124 = arith.divf %122, %123 : vector<8x128xf32>
    %125 = math.tanh %119 : vector<8x128xf32>
    %126 = vector.extract_strided_slice %124 {offsets = [0, 0], sizes = [8, 20], strides = [1, 1]} : vector<8x128xf32> to vector<8x20xf32>
    %127 = vector.extract_strided_slice %124 {offsets = [0, 20], sizes = [8, 20], strides = [1, 1]} : vector<8x128xf32> to vector<8x20xf32>
    %128 = vector.extract_strided_slice %125 {offsets = [0, 40], sizes = [8, 20], strides = [1, 1]} : vector<8x128xf32> to vector<8x20xf32>
    %129 = vector.extract_strided_slice %124 {offsets = [0, 60], sizes = [8, 20], strides = [1, 1]} : vector<8x128xf32> to vector<8x20xf32>
    %130 = arith.mulf %127, %111 : vector<8x20xf32>
    %131 = arith.mulf %126, %128 : vector<8x20xf32>
    %132 = arith.addf %130, %131 : vector<8x20xf32>
    %133 = math.tanh %132 : vector<8x20xf32>
    %134 = arith.mulf %129, %133 : vector<8x20xf32>
    %c0_45 = arith.constant 0 : index
    %c0_46 = arith.constant 0 : index
    %135 = vector.load %arg7[%c0_45, %c0_46] : memref<8x128xf32, #tpu.memory_space<vmem>>, vector<8x20xf32>
    tpu.vector_store %arg7[%c0_45, %c0_46], %134 {strides = array<i32>} : memref<8x128xf32, #tpu.memory_space<vmem>>, vector<8x20xf32>,
    %136 = vector.extract_strided_slice %5 {offsets = [48, 0], sizes = [8, 128], strides = [1, 1]} : vector<64x128xf32> to vector<8x128xf32>
    %c0_47 = arith.constant 0 : index
    %c0_48 = arith.constant 0 : index
    %137 = vector.load %arg7[%c0_47, %c0_48] : memref<8x128xf32, #tpu.memory_space<vmem>>, vector<8x128xf32>
    %138 = arith.truncf %137 : vector<8x128xf32> to vector<8x128xbf16>
    %cst_49 = arith.constant dense<0.000000e+00> : vector<8x128xf32>
    %139 = tpu.matmul %138, %6, %cst_49 {dimension_numbers = #tpu.dot_dimension_numbers<[1], [0], [0], [1], [0, 0, 1, 1], [], []>} : vector<8x128xbf16>, vector<128x128xbf16>, vector<8x128xf32> -> vector<8x128xf32>
    %140 = arith.addf %136, %139 : vector<8x128xf32>
    %141 = arith.negf %140 : vector<8x128xf32>
    %142 = math.exp %141 : vector<8x128xf32>
    %cst_50 = arith.constant 1.000000e+00 : f32
    %143 = vector.broadcast %cst_50 : f32 to vector<8x128xf32>
    %144 = arith.addf %143, %142 : vector<8x128xf32>
    %145 = arith.divf %143, %144 : vector<8x128xf32>
    %146 = math.tanh %140 : vector<8x128xf32>
    %147 = vector.extract_strided_slice %145 {offsets = [0, 0], sizes = [8, 20], strides = [1, 1]} : vector<8x128xf32> to vector<8x20xf32>
    %148 = vector.extract_strided_slice %145 {offsets = [0, 20], sizes = [8, 20], strides = [1, 1]} : vector<8x128xf32> to vector<8x20xf32>
    %149 = vector.extract_strided_slice %146 {offsets = [0, 40], sizes = [8, 20], strides = [1, 1]} : vector<8x128xf32> to vector<8x20xf32>
    %150 = vector.extract_strided_slice %145 {offsets = [0, 60], sizes = [8, 20], strides = [1, 1]} : vector<8x128xf32> to vector<8x20xf32>
    %151 = arith.mulf %148, %132 : vector<8x20xf32>
    %152 = arith.mulf %147, %149 : vector<8x20xf32>
    %153 = arith.addf %151, %152 : vector<8x20xf32>
    %154 = math.tanh %153 : vector<8x20xf32>
    %155 = arith.mulf %150, %154 : vector<8x20xf32>
    %c0_51 = arith.constant 0 : index
    %c0_52 = arith.constant 0 : index
    %156 = vector.load %arg7[%c0_51, %c0_52] : memref<8x128xf32, #tpu.memory_space<vmem>>, vector<8x20xf32>
    tpu.vector_store %arg7[%c0_51, %c0_52], %155 {strides = array<i32>} : memref<8x128xf32, #tpu.memory_space<vmem>>, vector<8x20xf32>,
    %157 = vector.extract_strided_slice %5 {offsets = [56, 0], sizes = [8, 128], strides = [1, 1]} : vector<64x128xf32> to vector<8x128xf32>
    %c0_53 = arith.constant 0 : index
    %c0_54 = arith.constant 0 : index
    %158 = vector.load %arg7[%c0_53, %c0_54] : memref<8x128xf32, #tpu.memory_space<vmem>>, vector<8x128xf32>
    %159 = arith.truncf %158 : vector<8x128xf32> to vector<8x128xbf16>
    %cst_55 = arith.constant dense<0.000000e+00> : vector<8x128xf32>
    %160 = tpu.matmul %159, %6, %cst_55 {dimension_numbers = #tpu.dot_dimension_numbers<[1], [0], [0], [1], [0, 0, 1, 1], [], []>} : vector<8x128xbf16>, vector<128x128xbf16>, vector<8x128xf32> -> vector<8x128xf32>
    %161 = arith.addf %157, %160 : vector<8x128xf32>
    %162 = arith.negf %161 : vector<8x128xf32>
    %163 = math.exp %162 : vector<8x128xf32>
    %cst_56 = arith.constant 1.000000e+00 : f32
    %164 = vector.broadcast %cst_56 : f32 to vector<8x128xf32>
    %165 = arith.addf %164, %163 : vector<8x128xf32>
    %166 = arith.divf %164, %165 : vector<8x128xf32>
    %167 = math.tanh %161 : vector<8x128xf32>
    %168 = vector.extract_strided_slice %166 {offsets = [0, 0], sizes = [8, 20], strides = [1, 1]} : vector<8x128xf32> to vector<8x20xf32>
    %169 = vector.extract_strided_slice %166 {offsets = [0, 20], sizes = [8, 20], strides = [1, 1]} : vector<8x128xf32> to vector<8x20xf32>
    %170 = vector.extract_strided_slice %167 {offsets = [0, 40], sizes = [8, 20], strides = [1, 1]} : vector<8x128xf32> to vector<8x20xf32>
    %171 = vector.extract_strided_slice %166 {offsets = [0, 60], sizes = [8, 20], strides = [1, 1]} : vector<8x128xf32> to vector<8x20xf32>
    %172 = arith.mulf %169, %153 : vector<8x20xf32>
    %173 = arith.mulf %168, %170 : vector<8x20xf32>
    %174 = arith.addf %172, %173 : vector<8x20xf32>
    %175 = math.tanh %174 : vector<8x20xf32>
    %176 = arith.mulf %171, %175 : vector<8x20xf32>
    %c0_57 = arith.constant 0 : index
    %c0_58 = arith.constant 0 : index
    %177 = vector.load %arg7[%c0_57, %c0_58] : memref<8x128xf32, #tpu.memory_space<vmem>>, vector<8x20xf32>
    tpu.vector_store %arg7[%c0_57, %c0_58], %176 {strides = array<i32>} : memref<8x128xf32, #tpu.memory_space<vmem>>, vector<8x20xf32>,
    %c0_59 = arith.constant 0 : index
    %c0_60 = arith.constant 0 : index
    %178 = vector.load %arg7[%c0_59, %c0_60] : memref<8x128xf32, #tpu.memory_space<vmem>>, vector<8x128xf32>
    %c0_61 = arith.constant 0 : index
    %c0_62 = arith.constant 0 : index
    %179 = vector.load %arg4[%c0_61, %c0_62] : memref<128x128xf32, #tpu.memory_space<vmem>>, vector<128x128xf32>
    %cst_63 = arith.constant dense<0.000000e+00> : vector<8x128xf32>
    %180 = tpu.matmul %178, %179, %cst_63 {dimension_numbers = #tpu.dot_dimension_numbers<[1], [0], [0], [1], [0, 0, 1, 1], [], []>} : vector<8x128xf32>, vector<128x128xf32>, vector<8x128xf32> -> vector<8x128xf32>
    %c0_64 = arith.constant 0 : index
    %c0_65 = arith.constant 0 : index
    %181 = vector.load %arg5[%c0_64, %c0_65] : memref<1x128xf32, #tpu.memory_space<vmem>>, vector<1x128xf32>
    %182 = vector.broadcast %181 : vector<1x128xf32> to vector<8x128xf32>
    %183 = arith.addf %180, %182 : vector<8x128xf32>
    %c0_66 = arith.constant 0 : index
    %c0_67 = arith.constant 0 : index
    %184 = vector.load %arg6[%c0_66, %c0_67] : memref<8x128xf32, #tpu.memory_space<vmem>>, vector<8x128xf32>
    tpu.vector_store %arg6[%c0_66, %c0_67], %183 {strides = array<i32>} : memref<8x128xf32, #tpu.memory_space<vmem>>, vector<8x128xf32>,
    return
  }
}

</mosaic_0001>

<llo_original>
// kernel: tpu_custom_call.1
$region0: #{tpu_custom_call.1}
  #allocation0 [shape = 'u32[]', space=smem, size = 0x4, offset = 0x4, fixed_abs, tag = 'smem constant byte address 0x4 - core index']
  #allocation1 [shape = 'u32[144,128]{1,0:T(1,128)}', space=vmem, size = 0x12000, scoped, tag = 'internal scratch']
  #allocation2 [shape = 'f32[8,128]{1,0:T(8,128)}', space=vmem, size = 0x1000, scoped, tag = 'scratch operand']
  %s0 = inlined_call_operand.hbm [shape: bf16[64,128], index: 0, kind: input, shape index: {}]
  %s1 = inlined_call_operand.hbm [shape: bf16[128,128], index: 1, kind: input, shape index: {}]
  %s2 = inlined_call_operand.hbm [shape: bf16[128,128], index: 2, kind: input, shape index: {}]
  %s3 = inlined_call_operand.vmem [shape: f32[1,128], index: 3, kind: input, shape index: {}]
  %s4 = inlined_call_operand.hbm [shape: f32[128,128], index: 4, kind: input, shape index: {}]
  %s5 = inlined_call_operand.vmem [shape: f32[1,128], index: 5, kind: input, shape index: {}]
  %s6 = inlined_call_operand.hbm [shape: f32[8,128], index: 6, kind: output, shape index: {}]
  %s7 = sld [smem:[#allocation0]]
  $region50: #{tpu_custom_call.1} parent=0
    _
  %s9 = ssub.s32 1, %s7
  %s10 = scalar_select 0, %s9, %s7
  $region1: #{tpu_custom_call.1} parent=0
    #allocation3 [shape = 'u8[16384]{0}', space=vmem, size = 0x4000, scoped, tag = 'input window, operand 0, single buffered']
    #allocation4 [shape = 's32[1]{0}', space=sflag, size = 0x4, scoped, tag = 'scoped memory for tpu_custom_call.1']
    #allocation5 [shape = 's32[1]{0}', space=sflag, size = 0x4, scoped, tag = 'scoped memory for tpu_custom_call.1']
    #allocation6 [shape = 'u8[32768]{0}', space=vmem, size = 0x8000, scoped, tag = 'input window, operand 1, single buffered']
    #allocation7 [shape = 's32[1]{0}', space=sflag, size = 0x4, scoped, tag = 'scoped memory for tpu_custom_call.1']
    #allocation8 [shape = 'u8[32768]{0}', space=vmem, size = 0x8000, scoped, tag = 'input window, operand 2, single buffered']
    #allocation9 [shape = 'u8[65536]{0}', space=vmem, size = 0x10000, scoped, tag = 'input window, operand 4, single buffered']
    #allocation10 [shape = 's32[1]{0}', space=sflag, size = 0x4, scoped, tag = 'scoped memory for tpu_custom_call.1']
    #allocation11 [shape = 'u8[4096]{0}', space=vmem, size = 0x1000, scoped, tag = 'output window, operand 0, single buffered']
    %11 = vsyncpa [#allocation4], 0
    %12 = vsyncpa [#allocation7], 0
    %13 = vsyncpa [#allocation10], 0
    %14 = vsyncpa [#allocation5], 0
    // Predicated region
    $region2: #{tpu_custom_call.1} parent=1 // pred_check
      _
    $region3: #{tpu_custom_call.1} parent=1 // pred_check_branch
      %16 = sbr.rel (0) target = $region5
    $region4: #{tpu_custom_call.1} parent=1 // pred_region
      %s18 = ssub.s32 512, 512
      %19 = vsyncadd [#allocation4], %s18
      %s20 = sshll.u32 [#allocation3], 4
      %s21 = int_to_ptr.vmem [resolvable:$true] %s20
      %26 = dma.hbm_to_vmem [thread:$0]  %s0, 512, %s21, [#allocation4], 64, 64, 4
    $region5: #{tpu_custom_call.1} parent=1 // pred_fallthru
      _
    // Predicated region
    $region6: #{tpu_custom_call.1} parent=1 // pred_check
      _
    $region7: #{tpu_custom_call.1} parent=1 // pred_check_branch
      %28 = sbr.rel (0) target = $region9
    $region8: #{tpu_custom_call.1} parent=1 // pred_region
      %s30 = ssub.s32 1024, 1024
      %31 = vsyncadd [#allocation7], %s30
      %s32 = sshll.u32 [#allocation6], 4
      %s33 = int_to_ptr.vmem [resolvable:$true] %s32
      %38 = dma.hbm_to_vmem [thread:$0]  %s1, 1024, %s33, [#allocation7], 64, 64, 4
    $region9: #{tpu_custom_call.1} parent=1 // pred_fallthru
      _
    // Predicated region
    $region10: #{tpu_custom_call.1} parent=1 // pred_check
      _
    $region11: #{tpu_custom_call.1} parent=1 // pred_check_branch
      %40 = sbr.rel (0) target = $region13
    $region12: #{tpu_custom_call.1} parent=1 // pred_region
      %s42 = ssub.s32 1024, 1024
      %43 = vsyncadd [#allocation7], %s42
      %s44 = sshll.u32 [#allocation8], 4
      %s45 = int_to_ptr.vmem [resolvable:$true] %s44
      %50 = dma.hbm_to_vmem [thread:$0]  %s2, 1024, %s45, [#allocation7], 64, 64, 4
    $region13: #{tpu_custom_call.1} parent=1 // pred_fallthru
      _
    // Predicated region
    $region14: #{tpu_custom_call.1} parent=1 // pred_check
      _
    $region15: #{tpu_custom_call.1} parent=1 // pred_check_branch
      %52 = sbr.rel (0) target = $region17
    $region16: #{tpu_custom_call.1} parent=1 // pred_region
      _
    $region17: #{tpu_custom_call.1} parent=1 // pred_fallthru
      _
    // Predicated region
    $region18: #{tpu_custom_call.1} parent=1 // pred_check
      _
    $region19: #{tpu_custom_call.1} parent=1 // pred_check_branch
      %54 = sbr.rel (0) target = $region21
    $region20: #{tpu_custom_call.1} parent=1 // pred_region
      %s56 = ssub.s32 2048, 2048
      %57 = vsyncadd [#allocation10], %s56
      %s58 = sshll.u32 [#allocation9], 4
      %s59 = int_to_ptr.vmem [resolvable:$true] %s58
      %64 = dma.hbm_to_vmem [thread:$0]  %s4, 2048, %s59, [#allocation10], 128, 128, 8
    $region21: #{tpu_custom_call.1} parent=1 // pred_fallthru
      _
    // Predicated region
    $region22: #{tpu_custom_call.1} parent=1 // pred_check
      _
    $region23: #{tpu_custom_call.1} parent=1 // pred_check_branch
      %66 = sbr.rel (0) target = $region25
    $region24: #{tpu_custom_call.1} parent=1 // pred_region
      _
    $region25: #{tpu_custom_call.1} parent=1 // pred_fallthru
      _
    // Predicated region
    $region26: #{tpu_custom_call.1} parent=1 // pred_check
      _
    $region27: #{tpu_custom_call.1} parent=1 // pred_check_branch
      %68 = sbr.rel (0) target = $region29
    $region28: #{tpu_custom_call.1} parent=1 // pred_region
      %69 = dma.done [#allocation4], 512
    $region29: #{tpu_custom_call.1} parent=1 // pred_fallthru
      _
    // Predicated region
    $region30: #{tpu_custom_call.1} parent=1 // pred_check
      _
    $region31: #{tpu_custom_call.1} parent=1 // pred_check_branch
      %71 = sbr.rel (0) target = $region33
    $region32: #{tpu_custom_call.1} parent=1 // pred_region
      %72 = dma.done [#allocation7], 1024
    $region33: #{tpu_custom_call.1} parent=1 // pred_fallthru
      _
    // Predicated region
    $region34: #{tpu_custom_call.1} parent=1 // pred_check
      _
    $region35: #{tpu_custom_call.1} parent=1 // pred_check_branch
      %74 = sbr.rel (0) target = $region37
    $region36: #{tpu_custom_call.1} parent=1 // pred_region
      %75 = dma.done [#allocation7], 1024
    $region37: #{tpu_custom_call.1} parent=1 // pred_fallthru
      _
    // Predicated region
    $region38: #{tpu_custom_call.1} parent=1 // pred_check
      _
    $region39: #{tpu_custom_call.1} parent=1 // pred_check_branch
      %77 = sbr.rel (0) target = $region41
    $region40: #{tpu_custom_call.1} parent=1 // pred_region
      %78 = dma.done [#allocation10], 2048
    $region41: #{tpu_custom_call.1} parent=1 // pred_fallthru
      _
    %v80 = vld [vmem:[#allocation3] sm:$0xf]
    %v81 = vld [vmem:[#allocation3 + $0x4] sm:$0xf]
    %v82 = vld [vmem:[#allocation3 + $0x8] sm:$0xf]
    %v83 = vld [vmem:[#allocation3 + $0xc] sm:$0xf]
    %v84 = vld [vmem:[#allocation3 + $0x10] sm:$0xf]
    %v85 = vld [vmem:[#allocation3 + $0x14] sm:$0xf]
    %v86 = vld [vmem:[#allocation3 + $0x18] sm:$0xf]
    %v87 = vld [vmem:[#allocation3 + $0x1c] sm:$0xf]
    %v88 = vld [vmem:[#allocation6] sm:$0xf]
    %v89 = vld [vmem:[#allocation6 + $0x4] sm:$0xf]
    %v90 = vld [vmem:[#allocation6 + $0x8] sm:$0xf]
    %v91 = vld [vmem:[#allocation6 + $0xc] sm:$0xf]
    %v92 = vld [vmem:[#allocation6 + $0x10] sm:$0xf]
    %v93 = vld [vmem:[#allocation6 + $0x14] sm:$0xf]
    %v94 = vld [vmem:[#allocation6 + $0x18] sm:$0xf]
    %v95 = vld [vmem:[#allocation6 + $0x1c] sm:$0xf]
    %v96 = vld [vmem:[#allocation6 + $0x20] sm:$0xf]
    %v97 = vld [vmem:[#allocation6 + $0x24] sm:$0xf]
    %v98 = vld [vmem:[#allocation6 + $0x28] sm:$0xf]
    %v99 = vld [vmem:[#allocation6 + $0x2c] sm:$0xf]
    %v100 = vld [vmem:[#allocation6 + $0x30] sm:$0xf]
    %v101 = vld [vmem:[#allocation6 + $0x34] sm:$0xf]
    %v102 = vld [vmem:[#allocation6 + $0x38] sm:$0xf]
    %v103 = vld [vmem:[#allocation6 + $0x3c] sm:$0xf]
    %v104 = vld [vmem:[%s3] sm:$0x1]
    %v106 = vlaneseq
    %v107 = vshrl.u32 %v106, 7
    %v108 = vsub.s32 0, %v107
    %v109 = vrot.slane %v104, %v108
    %v119 = vunpack.c.l.b16 %v80
    %v120 = vunpack.c.l.b16 %v81
    %v121 = vunpack.c.l.b16 %v82
    %v122 = vunpack.c.l.b16 %v83
    %v123 = vunpack.c.l.b16 %v84
    %v124 = vunpack.c.l.b16 %v85
    %v125 = vunpack.c.l.b16 %v86
    %v126 = vunpack.c.l.b16 %v87
    %v127 = vpack.c.b16 %v120, %v119
    %v128 = vpack.c.b16 %v122, %v121
    %v129 = vpack.c.b16 %v124, %v123
    %v130 = vpack.c.b16 %v126, %v125
    %v151 = vunpack.c.l.b16 %v88
    %v152 = vunpack.c.l.b16 %v89
    %v153 = vunpack.c.l.b16 %v90
    %v154 = vunpack.c.l.b16 %v91
    %v155 = vunpack.c.l.b16 %v92
    %v156 = vunpack.c.l.b16 %v93
    %v157 = vunpack.c.l.b16 %v94
    %v158 = vunpack.c.l.b16 %v95
    %v159 = vunpack.c.l.b16 %v96
    %v160 = vunpack.c.l.b16 %v97
    %v161 = vunpack.c.l.b16 %v98
    %v162 = vunpack.c.l.b16 %v99
    %v163 = vunpack.c.l.b16 %v100
    %v164 = vunpack.c.l.b16 %v101
    %v165 = vunpack.c.l.b16 %v102
    %v166 = vunpack.c.l.b16 %v103
    %v167 = vpack.c.b16 %v152, %v151
    %v168 = vpack.c.b16 %v154, %v153
    %v169 = vpack.c.b16 %v156, %v155
    %v170 = vpack.c.b16 %v158, %v157
    %v171 = vpack.c.b16 %v160, %v159
    %v172 = vpack.c.b16 %v162, %v161
    %v173 = vpack.c.b16 %v164, %v163
    %v174 = vpack.c.b16 %v166, %v165
    %183 = vmatprep.subr.bf16.mxu0 0
    %184 = vmatpush1.bf16.msra.mxu0 %v167
    %185 = vmatprep.subr.bf16.mxu0 0
    %186 = vmatpush1.bf16.msra.mxu0 %v168
    %187 = vmatprep.subr.bf16.mxu0 0
    %188 = vmatpush1.bf16.msra.mxu0 %v169
    %189 = vmatprep.subr.bf16.mxu0 0
    %190 = vmatpush1.bf16.msra.mxu0 %v170
    %191 = vmatprep.subr.bf16.mxu0 0
    %192 = vmatpush1.bf16.msra.mxu0 %v171
    %193 = vmatprep.subr.bf16.mxu0 0
    %194 = vmatpush1.bf16.msra.mxu0 %v172
    %195 = vmatprep.subr.bf16.mxu0 0
    %196 = vmatpush1.bf16.msra.mxu0 %v173
    %197 = vmatprep.subr.bf16.mxu0 0
    %198 = vmatpush1.bf16.msra.mxu0 %v174
    %199 = vmatprep.subr.bf16.mxu0 0
    %200 = vmatpush1.bf16.msra.mxu0 0
    %201 = vmatprep.subr.bf16.mxu0 0
    %202 = vmatpush1.bf16.msra.mxu0 0
    %203 = vmatprep.subr.bf16.mxu0 0
    %204 = vmatpush1.bf16.msra.mxu0 0
    %205 = vmatprep.subr.bf16.mxu0 0
    %206 = vmatpush1.bf16.msra.mxu0 0
    %207 = vmatprep.subr.bf16.mxu0 0
    %208 = vmatpush1.bf16.msra.mxu0 0
    %209 = vmatprep.subr.bf16.mxu0 0
    %210 = vmatpush1.bf16.msra.mxu0 0
    %211 = vmatprep.subr.bf16.mxu0 0
    %212 = vmatpush1.bf16.msra.mxu0 0
    %213 = vmatprep.subr.bf16.mxu0 0
    %214 = vmatpush1.bf16.msra.mxu0 0
    %215 = vmatprep.mubr.bf16.mxu0 0
    %216 = vmatmul.mubr.bf16.gmra.mrb[0].mxu0 %v127
    %v217 = vpop.f32.mrb[0].mxu0
    %v218 = vadd.f32 %v109, %v217
    %v219 = vpop.f32.mrb[0].mxu0
    %v220 = vpop.f32.mrb[0].mxu0
    %v221 = vadd.f32 %v109, %v220
    %v222 = vpop.f32.mrb[0].mxu0
    %223 = vmatprep.mubr.bf16.mxu0 0
    %224 = vmatmul.mubr.bf16.gmra.mrb[0].mxu0 %v128
    %v225 = vpop.f32.mrb[0].mxu0
    %v226 = vadd.f32 %v109, %v225
    %v227 = vpop.f32.mrb[0].mxu0
    %v228 = vpop.f32.mrb[0].mxu0
    %v229 = vadd.f32 %v109, %v228
    %v230 = vpop.f32.mrb[0].mxu0
    %231 = vmatprep.mubr.bf16.mxu0 0
    %232 = vmatmul.mubr.bf16.gmra.mrb[0].mxu0 %v129
    %v233 = vpop.f32.mrb[0].mxu0
    %v234 = vadd.f32 %v109, %v233
    %v235 = vpop.f32.mrb[0].mxu0
    %v236 = vpop.f32.mrb[0].mxu0
    %v237 = vadd.f32 %v109, %v236
    %v238 = vpop.f32.mrb[0].mxu0
    %239 = vmatprep.mubr.bf16.mxu0 0
    %240 = vmatmul.mubr.bf16.gmra.mrb[0].mxu0 %v130
    %v241 = vpop.f32.mrb[0].mxu0
    %v242 = vadd.f32 %v109, %v241
    %v243 = vpop.f32.mrb[0].mxu0
    %v244 = vpop.f32.mrb[0].mxu0
    %v245 = vadd.f32 %v109, %v244
    %v246 = vpop.f32.mrb[0].mxu0
    %247 = vdwg.mxu0
    %v248 = vld [vmem:[#allocation8] sm:$0xf]
    %v249 = vld [vmem:[#allocation8 + $0x4] sm:$0xf]
    %v250 = vld [vmem:[#allocation8 + $0x8] sm:$0xf]
    %v251 = vld [vmem:[#allocation8 + $0xc] sm:$0xf]
    %v252 = vld [vmem:[#allocation8 + $0x10] sm:$0xf]
    %v253 = vld [vmem:[#allocation8 + $0x14] sm:$0xf]
    %v254 = vld [vmem:[#allocation8 + $0x18] sm:$0xf]
    %v255 = vld [vmem:[#allocation8 + $0x1c] sm:$0xf]
    %v256 = vld [vmem:[#allocation8 + $0x20] sm:$0xf]
    %v257 = vld [vmem:[#allocation8 + $0x24] sm:$0xf]
    %v258 = vld [vmem:[#allocation8 + $0x28] sm:$0xf]
    %v259 = vld [vmem:[#allocation8 + $0x2c] sm:$0xf]
    %v260 = vld [vmem:[#allocation8 + $0x30] sm:$0xf]
    %v261 = vld [vmem:[#allocation8 + $0x34] sm:$0xf]
    %v262 = vld [vmem:[#allocation8 + $0x38] sm:$0xf]
    %v263 = vld [vmem:[#allocation8 + $0x3c] sm:$0xf]
    %264 = vst [vmem:[#allocation2] sm:$0xff] 0.0
    %v265 = vld [vmem:[#allocation2] sm:$0xff]
    %v266 = vpack.c.bf16 %v265, %v265
    %v283 = vunpack.c.l.b16 %v248
    %v284 = vunpack.c.l.b16 %v249
    %v285 = vunpack.c.l.b16 %v250
    %v286 = vunpack.c.l.b16 %v251
    %v287 = vunpack.c.l.b16 %v252
    %v288 = vunpack.c.l.b16 %v253
    %v289 = vunpack.c.l.b16 %v254
    %v290 = vunpack.c.l.b16 %v255
    %v291 = vunpack.c.l.b16 %v256
    %v292 = vunpack.c.l.b16 %v257
    %v293 = vunpack.c.l.b16 %v258
    %v294 = vunpack.c.l.b16 %v259
    %v295 = vunpack.c.l.b16 %v260
    %v296 = vunpack.c.l.b16 %v261
    %v297 = vunpack.c.l.b16 %v262
    %v298 = vunpack.c.l.b16 %v263
    %v299 = vpack.c.b16 %v284, %v283
    %v300 = vpack.c.b16 %v286, %v285
    %v301 = vpack.c.b16 %v288, %v287
    %v302 = vpack.c.b16 %v290, %v289
    %v303 = vpack.c.b16 %v292, %v291
    %v304 = vpack.c.b16 %v294, %v293
    %v305 = vpack.c.b16 %v296, %v295
    %v306 = vpack.c.b16 %v298, %v297
    %315 = vmatprep.subr.bf16.mxu0 0
    %316 = vmatpush1.bf16.msra.mxu0 %v299
    %317 = vmatprep.subr.bf16.mxu0 0
    %318 = vmatpush1.bf16.msra.mxu0 %v300
    %319 = vmatprep.subr.bf16.mxu0 0
    %320 = vmatpush1.bf16.msra.mxu0 %v301
    %321 = vmatprep.subr.bf16.mxu0 0
    %322 = vmatpush1.bf16.msra.mxu0 %v302
    %323 = vmatprep.subr.bf16.mxu0 0
    %324 = vmatpush1.bf16.msra.mxu0 %v303
    %325 = vmatprep.subr.bf16.mxu0 0
    %326 = vmatpush1.bf16.msra.mxu0 %v304
    %327 = vmatprep.subr.bf16.mxu0 0
    %328 = vmatpush1.bf16.msra.mxu0 %v305
    %329 = vmatprep.subr.bf16.mxu0 0
    %330 = vmatpush1.bf16.msra.mxu0 %v306
    %331 = vmatprep.subr.bf16.mxu0 0
    %332 = vmatpush1.bf16.msra.mxu0 0
    %333 = vmatprep.subr.bf16.mxu0 0
    %334 = vmatpush1.bf16.msra.mxu0 0
    %335 = vmatprep.subr.bf16.mxu0 0
    %336 = vmatpush1.bf16.msra.mxu0 0
    %337 = vmatprep.subr.bf16.mxu0 0
    %338 = vmatpush1.bf16.msra.mxu0 0
    %339 = vmatprep.subr.bf16.mxu0 0
    %340 = vmatpush1.bf16.msra.mxu0 0
    %341 = vmatprep.subr.bf16.mxu0 0
    %342 = vmatpush1.bf16.msra.mxu0 0
    %343 = vmatprep.subr.bf16.mxu0 0
    %344 = vmatpush1.bf16.msra.mxu0 0
    %345 = vmatprep.subr.bf16.mxu0 0
    %346 = vmatpush1.bf16.msra.mxu0 0
    %347 = vmatprep.mubr.bf16.mxu0 0
    %348 = vmatmul.mubr.bf16.gmra.mrb[0].mxu0 %v266
    %v349 = vpop.f32.mrb[0].mxu0
    %v350 = vadd.f32 0.0, %v349
    %v351 = vpop.f32.mrb[0].mxu0
    %v352 = vpop.f32.mrb[0].mxu0
    %v353 = vpop.f32.mrb[0].mxu0
    %354 = vdwg.mxu0
    %v355 = vadd.f32 %v218, %v350
    %v356 = vxor.u32 %v355, 2147483648
    %v357 = vmul.f32 %v356, 1.442695
    %v358 = vpow.pop %v357
    %v359 = vadd.f32 %v358, 1.0
    %v360 = vrcp.pop %v359
    %v361 = vmul.f32 1.0, %v360
    %v362 = vtanh.pop %v355
    %v363 = vmul.f32 %v361, 0.0
    %365 = vrot.lane.b32.xlu0 %v362, 88
    %v366 = vpop.permute.xlu0 %365
    %v368 = vmul.f32 %v361, %v366
    %370 = vrot.lane.b32.xlu0 %v368, 20
    %v371 = vpop.permute.xlu0 %370
    %v373 = vadd.f32 %v363, %v371
    %v374 = vtanh.pop %v373
    %376 = vrot.lane.b32.xlu0 %v374, 40
    %v377 = vpop.permute.xlu0 %376
    %v379 = vmul.f32 %v361, %v377
    %381 = vrot.lane.b32.xlu0 %v379, 68
    %v382 = vpop.permute.xlu0 %381
    %vm384 = vcmask 162816
    %385 = vst.msk [vmem:[#allocation2] sm:$0xff] %vm384, %v382
    %v386 = vld [vmem:[#allocation2] sm:$0xff]
    %v387 = vpack.c.bf16 %v386, %v386
    %388 = vmatprep.subr.bf16.mxu0 0
    %389 = vmatpush1.bf16.msra.mxu0 %v299
    %390 = vmatprep.subr.bf16.mxu0 0
    %391 = vmatpush1.bf16.msra.mxu0 %v300
    %392 = vmatprep.subr.bf16.mxu0 0
    %393 = vmatpush1.bf16.msra.mxu0 %v301
    %394 = vmatprep.subr.bf16.mxu0 0
    %395 = vmatpush1.bf16.msra.mxu0 %v302
    %396 = vmatprep.subr.bf16.mxu0 0
    %397 = vmatpush1.bf16.msra.mxu0 %v303
    %398 = vmatprep.subr.bf16.mxu0 0
    %399 = vmatpush1.bf16.msra.mxu0 %v304
    %400 = vmatprep.subr.bf16.mxu0 0
    %401 = vmatpush1.bf16.msra.mxu0 %v305
    %402 = vmatprep.subr.bf16.mxu0 0
    %403 = vmatpush1.bf16.msra.mxu0 %v306
    %404 = vmatprep.subr.bf16.mxu0 0
    %405 = vmatpush1.bf16.msra.mxu0 0
    %406 = vmatprep.subr.bf16.mxu0 0
    %407 = vmatpush1.bf16.msra.mxu0 0
    %408 = vmatprep.subr.bf16.mxu0 0
    %409 = vmatpush1.bf16.msra.mxu0 0
    %410 = vmatprep.subr.bf16.mxu0 0
    %411 = vmatpush1.bf16.msra.mxu0 0
    %412 = vmatprep.subr.bf16.mxu0 0
    %413 = vmatpush1.bf16.msra.mxu0 0
    %414 = vmatprep.subr.bf16.mxu0 0
    %415 = vmatpush1.bf16.msra.mxu0 0
    %416 = vmatprep.subr.bf16.mxu0 0
    %417 = vmatpush1.bf16.msra.mxu0 0
    %418 = vmatprep.subr.bf16.mxu0 0
    %419 = vmatpush1.bf16.msra.mxu0 0
    %420 = vmatprep.mubr.bf16.mxu0 0
    %421 = vmatmul.mubr.bf16.gmra.mrb[0].mxu0 %v387
    %v422 = vpop.f32.mrb[0].mxu0
    %v423 = vadd.f32 0.0, %v422
    %v424 = vpop.f32.mrb[0].mxu0
    %v425 = vpop.f32.mrb[0].mxu0
    %v426 = vpop.f32.mrb[0].mxu0
    %427 = vdwg.mxu0
    %v428 = vadd.f32 %v221, %v423
    %v429 = vxor.u32 %v428, 2147483648
    %v430 = vmul.f32 %v429, 1.442695
    %v431 = vpow.pop %v430
    %v432 = vadd.f32 %v431, 1.0
    %v433 = vrcp.pop %v432
    %v434 = vmul.f32 1.0, %v433
    %v435 = vtanh.pop %v428
    %v436 = vmul.f32 %v434, %v373
    %438 = vrot.lane.b32.xlu0 %v435, 88
    %v439 = vpop.permute.xlu0 %438
    %v441 = vmul.f32 %v434, %v439
    %443 = vrot.lane.b32.xlu0 %v441, 20
    %v444 = vpop.permute.xlu0 %443
    %v446 = vadd.f32 %v436, %v444
    %v447 = vtanh.pop %v446
    %449 = vrot.lane.b32.xlu0 %v447, 40
    %v450 = vpop.permute.xlu0 %449
    %v452 = vmul.f32 %v434, %v450
    %454 = vrot.lane.b32.xlu0 %v452, 68
    %v455 = vpop.permute.xlu0 %454
    %457 = vst.msk [vmem:[#allocation2] sm:$0xff] %vm384, %v455
    %v458 = vld [vmem:[#allocation2] sm:$0xff]
    %v459 = vpack.c.bf16 %v458, %v458
    %460 = vmatprep.subr.bf16.mxu0 0
    %461 = vmatpush1.bf16.msra.mxu0 %v299
    %462 = vmatprep.subr.bf16.mxu0 0
    %463 = vmatpush1.bf16.msra.mxu0 %v300
    %464 = vmatprep.subr.bf16.mxu0 0
    %465 = vmatpush1.bf16.msra.mxu0 %v301
    %466 = vmatprep.subr.bf16.mxu0 0
    %467 = vmatpush1.bf16.msra.mxu0 %v302
    %468 = vmatprep.subr.bf16.mxu0 0
    %469 = vmatpush1.bf16.msra.mxu0 %v303
    %470 = vmatprep.subr.bf16.mxu0 0
    %471 = vmatpush1.bf16.msra.mxu0 %v304
    %472 = vmatprep.subr.bf16.mxu0 0
    %473 = vmatpush1.bf16.msra.mxu0 %v305
    %474 = vmatprep.subr.bf16.mxu0 0
    %475 = vmatpush1.bf16.msra.mxu0 %v306
    %476 = vmatprep.subr.bf16.mxu0 0
    %477 = vmatpush1.bf16.msra.mxu0 0
    %478 = vmatprep.subr.bf16.mxu0 0
    %479 = vmatpush1.bf16.msra.mxu0 0
    %480 = vmatprep.subr.bf16.mxu0 0
    %481 = vmatpush1.bf16.msra.mxu0 0
    %482 = vmatprep.subr.bf16.mxu0 0
    %483 = vmatpush1.bf16.msra.mxu0 0
    %484 = vmatprep.subr.bf16.mxu0 0
    %485 = vmatpush1.bf16.msra.mxu0 0
    %486 = vmatprep.subr.bf16.mxu0 0
    %487 = vmatpush1.bf16.msra.mxu0 0
    %488 = vmatprep.subr.bf16.mxu0 0
    %489 = vmatpush1.bf16.msra.mxu0 0
    %490 = vmatprep.subr.bf16.mxu0 0
    %491 = vmatpush1.bf16.msra.mxu0 0
    %492 = vmatprep.mubr.bf16.mxu0 0
    %493 = vmatmul.mubr.bf16.gmra.mrb[0].mxu0 %v459
    %v494 = vpop.f32.mrb[0].mxu0
    %v495 = vadd.f32 0.0, %v494
    %v496 = vpop.f32.mrb[0].mxu0
    %v497 = vpop.f32.mrb[0].mxu0
    %v498 = vpop.f32.mrb[0].mxu0
    %499 = vdwg.mxu0
    %v500 = vadd.f32 %v226, %v495
    %v501 = vxor.u32 %v500, 2147483648
    %v502 = vmul.f32 %v501, 1.442695
    %v503 = vpow.pop %v502
    %v504 = vadd.f32 %v503, 1.0
    %v505 = vrcp.pop %v504
    %v506 = vmul.f32 1.0, %v505
    %v507 = vtanh.pop %v500
    %v508 = vmul.f32 %v506, %v446
    %510 = vrot.lane.b32.xlu0 %v507, 88
    %v511 = vpop.permute.xlu0 %510
    %v513 = vmul.f32 %v506, %v511
    %515 = vrot.lane.b32.xlu0 %v513, 20
    %v516 = vpop.permute.xlu0 %515
    %v518 = vadd.f32 %v508, %v516
    %v519 = vtanh.pop %v518
    %521 = vrot.lane.b32.xlu0 %v519, 40
    %v522 = vpop.permute.xlu0 %521
    %v524 = vmul.f32 %v506, %v522
    %526 = vrot.lane.b32.xlu0 %v524, 68
    %v527 = vpop.permute.xlu0 %526
    %529 = vst.msk [vmem:[#allocation2] sm:$0xff] %vm384, %v527
    %v530 = vld [vmem:[#allocation2] sm:$0xff]
    %v531 = vpack.c.bf16 %v530, %v530
    %532 = vmatprep.subr.bf16.mxu0 0
    %533 = vmatpush1.bf16.msra.mxu0 %v299
    %534 = vmatprep.subr.bf16.mxu0 0
    %535 = vmatpush1.bf16.msra.mxu0 %v300
    %536 = vmatprep.subr.bf16.mxu0 0
    %537 = vmatpush1.bf16.msra.mxu0 %v301
    %538 = vmatprep.subr.bf16.mxu0 0
    %539 = vmatpush1.bf16.msra.mxu0 %v302
    %540 = vmatprep.subr.bf16.mxu0 0
    %541 = vmatpush1.bf16.msra.mxu0 %v303
    %542 = vmatprep.subr.bf16.mxu0 0
    %543 = vmatpush1.bf16.msra.mxu0 %v304
    %544 = vmatprep.subr.bf16.mxu0 0
    %545 = vmatpush1.bf16.msra.mxu0 %v305
    %546 = vmatprep.subr.bf16.mxu0 0
    %547 = vmatpush1.bf16.msra.mxu0 %v306
    %548 = vmatprep.subr.bf16.mxu0 0
    %549 = vmatpush1.bf16.msra.mxu0 0
    %550 = vmatprep.subr.bf16.mxu0 0
    %551 = vmatpush1.bf16.msra.mxu0 0
    %552 = vmatprep.subr.bf16.mxu0 0
    %553 = vmatpush1.bf16.msra.mxu0 0
    %554 = vmatprep.subr.bf16.mxu0 0
    %555 = vmatpush1.bf16.msra.mxu0 0
    %556 = vmatprep.subr.bf16.mxu0 0
    %557 = vmatpush1.bf16.msra.mxu0 0
    %558 = vmatprep.subr.bf16.mxu0 0
    %559 = vmatpush1.bf16.msra.mxu0 0
    %560 = vmatprep.subr.bf16.mxu0 0
    %561 = vmatpush1.bf16.msra.mxu0 0
    %562 = vmatprep.subr.bf16.mxu0 0
    %563 = vmatpush1.bf16.msra.mxu0 0
    %564 = vmatprep.mubr.bf16.mxu0 0
    %565 = vmatmul.mubr.bf16.gmra.mrb[0].mxu0 %v531
    %v566 = vpop.f32.mrb[0].mxu0
    %v567 = vadd.f32 0.0, %v566
    %v568 = vpop.f32.mrb[0].mxu0
    %v569 = vpop.f32.mrb[0].mxu0
    %v570 = vpop.f32.mrb[0].mxu0
    %571 = vdwg.mxu0
    %v572 = vadd.f32 %v229, %v567
    %v573 = vxor.u32 %v572, 2147483648
    %v574 = vmul.f32 %v573, 1.442695
    %v575 = vpow.pop %v574
    %v576 = vadd.f32 %v575, 1.0
    %v577 = vrcp.pop %v576
    %v578 = vmul.f32 1.0, %v577
    %v579 = vtanh.pop %v572
    %v580 = vmul.f32 %v578, %v518
    %582 = vrot.lane.b32.xlu0 %v579, 88
    %v583 = vpop.permute.xlu0 %582
    %v585 = vmul.f32 %v578, %v583
    %587 = vrot.lane.b32.xlu0 %v585, 20
    %v588 = vpop.permute.xlu0 %587
    %v590 = vadd.f32 %v580, %v588
    %v591 = vtanh.pop %v590
    %593 = vrot.lane.b32.xlu0 %v591, 40
    %v594 = vpop.permute.xlu0 %593
    %v596 = vmul.f32 %v578, %v594
    %598 = vrot.lane.b32.xlu0 %v596, 68
    %v599 = vpop.permute.xlu0 %598
    %601 = vst.msk [vmem:[#allocation2] sm:$0xff] %vm384, %v599
    %v602 = vld [vmem:[#allocation2] sm:$0xff]
    %v603 = vpack.c.bf16 %v602, %v602
    %604 = vmatprep.subr.bf16.mxu0 0
    %605 = vmatpush1.bf16.msra.mxu0 %v299
    %606 = vmatprep.subr.bf16.mxu0 0
    %607 = vmatpush1.bf16.msra.mxu0 %v300
    %608 = vmatprep.subr.bf16.mxu0 0
    %609 = vmatpush1.bf16.msra.mxu0 %v301
    %610 = vmatprep.subr.bf16.mxu0 0
    %611 = vmatpush1.bf16.msra.mxu0 %v302
    %612 = vmatprep.subr.bf16.mxu0 0
    %613 = vmatpush1.bf16.msra.mxu0 %v303
    %614 = vmatprep.subr.bf16.mxu0 0
    %615 = vmatpush1.bf16.msra.mxu0 %v304
    %616 = vmatprep.subr.bf16.mxu0 0
    %617 = vmatpush1.bf16.msra.mxu0 %v305
    %618 = vmatprep.subr.bf16.mxu0 0
    %619 = vmatpush1.bf16.msra.mxu0 %v306
    %620 = vmatprep.subr.bf16.mxu0 0
    %621 = vmatpush1.bf16.msra.mxu0 0
    %622 = vmatprep.subr.bf16.mxu0 0
    %623 = vmatpush1.bf16.msra.mxu0 0
    %624 = vmatprep.subr.bf16.mxu0 0
    %625 = vmatpush1.bf16.msra.mxu0 0
    %626 = vmatprep.subr.bf16.mxu0 0
    %627 = vmatpush1.bf16.msra.mxu0 0
    %628 = vmatprep.subr.bf16.mxu0 0
    %629 = vmatpush1.bf16.msra.mxu0 0
    %630 = vmatprep.subr.bf16.mxu0 0
    %631 = vmatpush1.bf16.msra.mxu0 0
    %632 = vmatprep.subr.bf16.mxu0 0
    %633 = vmatpush1.bf16.msra.mxu0 0
    %634 = vmatprep.subr.bf16.mxu0 0
    %635 = vmatpush1.bf16.msra.mxu0 0
    %636 = vmatprep.mubr.bf16.mxu0 0
    %637 = vmatmul.mubr.bf16.gmra.mrb[0].mxu0 %v603
    %v638 = vpop.f32.mrb[0].mxu0
    %v639 = vadd.f32 0.0, %v638
    %v640 = vpop.f32.mrb[0].mxu0
    %v641 = vpop.f32.mrb[0].mxu0
    %v642 = vpop.f32.mrb[0].mxu0
    %643 = vdwg.mxu0
    %v644 = vadd.f32 %v234, %v639
    %v645 = vxor.u32 %v644, 2147483648
    %v646 = vmul.f32 %v645, 1.442695
    %v647 = vpow.pop %v646
    %v648 = vadd.f32 %v647, 1.0
    %v649 = vrcp.pop %v648
    %v650 = vmul.f32 1.0, %v649
    %v651 = vtanh.pop %v644
    %v652 = vmul.f32 %v650, %v590
    %654 = vrot.lane.b32.xlu0 %v651, 88
    %v655 = vpop.permute.xlu0 %654
    %v657 = vmul.f32 %v650, %v655
    %659 = vrot.lane.b32.xlu0 %v657, 20
    %v660 = vpop.permute.xlu0 %659
    %v662 = vadd.f32 %v652, %v660
    %v663 = vtanh.pop %v662
    %665 = vrot.lane.b32.xlu0 %v663, 40
    %v666 = vpop.permute.xlu0 %665
    %v668 = vmul.f32 %v650, %v666
    %670 = vrot.lane.b32.xlu0 %v668, 68
    %v671 = vpop.permute.xlu0 %670
    %673 = vst.msk [vmem:[#allocation2] sm:$0xff] %vm384, %v671
    %v674 = vld [vmem:[#allocation2] sm:$0xff]
    %v675 = vpack.c.bf16 %v674, %v674
    %676 = vmatprep.subr.bf16.mxu0 0
    %677 = vmatpush1.bf16.msra.mxu0 %v299
    %678 = vmatprep.subr.bf16.mxu0 0
    %679 = vmatpush1.bf16.msra.mxu0 %v300
    %680 = vmatprep.subr.bf16.mxu0 0
    %681 = vmatpush1.bf16.msra.mxu0 %v301
    %682 = vmatprep.subr.bf16.mxu0 0
    %683 = vmatpush1.bf16.msra.mxu0 %v302
    %684 = vmatprep.subr.bf16.mxu0 0
    %685 = vmatpush1.bf16.msra.mxu0 %v303
    %686 = vmatprep.subr.bf16.mxu0 0
    %687 = vmatpush1.bf16.msra.mxu0 %v304
    %688 = vmatprep.subr.bf16.mxu0 0
    %689 = vmatpush1.bf16.msra.mxu0 %v305
    %690 = vmatprep.subr.bf16.mxu0 0
    %691 = vmatpush1.bf16.msra.mxu0 %v306
    %692 = vmatprep.subr.bf16.mxu0 0
    %693 = vmatpush1.bf16.msra.mxu0 0
    %694 = vmatprep.subr.bf16.mxu0 0
    %695 = vmatpush1.bf16.msra.mxu0 0
    %696 = vmatprep.subr.bf16.mxu0 0
    %697 = vmatpush1.bf16.msra.mxu0 0
    %698 = vmatprep.subr.bf16.mxu0 0
    %699 = vmatpush1.bf16.msra.mxu0 0
    %700 = vmatprep.subr.bf16.mxu0 0
    %701 = vmatpush1.bf16.msra.mxu0 0
    %702 = vmatprep.subr.bf16.mxu0 0
    %703 = vmatpush1.bf16.msra.mxu0 0
    %704 = vmatprep.subr.bf16.mxu0 0
    %705 = vmatpush1.bf16.msra.mxu0 0
    %706 = vmatprep.subr.bf16.mxu0 0
    %707 = vmatpush1.bf16.msra.mxu0 0
    %708 = vmatprep.mubr.bf16.mxu0 0
    %709 = vmatmul.mubr.bf16.gmra.mrb[0].mxu0 %v675
    %v710 = vpop.f32.mrb[0].mxu0
    %v711 = vadd.f32 0.0, %v710
    %v712 = vpop.f32.mrb[0].mxu0
    %v713 = vpop.f32.mrb[0].mxu0
    %v714 = vpop.f32.mrb[0].mxu0
    %715 = vdwg.mxu0
    %v716 = vadd.f32 %v237, %v711
    %v717 = vxor.u32 %v716, 2147483648
    %v718 = vmul.f32 %v717, 1.442695
    %v719 = vpow.pop %v718
    %v720 = vadd.f32 %v719, 1.0
    %v721 = vrcp.pop %v720
    %v722 = vmul.f32 1.0, %v721
    %v723 = vtanh.pop %v716
    %v724 = vmul.f32 %v722, %v662
    %726 = vrot.lane.b32.xlu0 %v723, 88
    %v727 = vpop.permute.xlu0 %726
    %v729 = vmul.f32 %v722, %v727
    %731 = vrot.lane.b32.xlu0 %v729, 20
    %v732 = vpop.permute.xlu0 %731
    %v734 = vadd.f32 %v724, %v732
    %v735 = vtanh.pop %v734
    %737 = vrot.lane.b32.xlu0 %v735, 40
    %v738 = vpop.permute.xlu0 %737
    %v740 = vmul.f32 %v722, %v738
    %742 = vrot.lane.b32.xlu0 %v740, 68
    %v743 = vpop.permute.xlu0 %742
    %745 = vst.msk [vmem:[#allocation2] sm:$0xff] %vm384, %v743
    %v746 = vld [vmem:[#allocation2] sm:$0xff]
    %v747 = vpack.c.bf16 %v746, %v746
    %748 = vmatprep.subr.bf16.mxu0 0
    %749 = vmatpush1.bf16.msra.mxu0 %v299
    %750 = vmatprep.subr.bf16.mxu0 0
    %751 = vmatpush1.bf16.msra.mxu0 %v300
    %752 = vmatprep.subr.bf16.mxu0 0
    %753 = vmatpush1.bf16.msra.mxu0 %v301
    %754 = vmatprep.subr.bf16.mxu0 0
    %755 = vmatpush1.bf16.msra.mxu0 %v302
    %756 = vmatprep.subr.bf16.mxu0 0
    %757 = vmatpush1.bf16.msra.mxu0 %v303
    %758 = vmatprep.subr.bf16.mxu0 0
    %759 = vmatpush1.bf16.msra.mxu0 %v304
    %760 = vmatprep.subr.bf16.mxu0 0
    %761 = vmatpush1.bf16.msra.mxu0 %v305
    %762 = vmatprep.subr.bf16.mxu0 0
    %763 = vmatpush1.bf16.msra.mxu0 %v306
    %764 = vmatprep.subr.bf16.mxu0 0
    %765 = vmatpush1.bf16.msra.mxu0 0
    %766 = vmatprep.subr.bf16.mxu0 0
    %767 = vmatpush1.bf16.msra.mxu0 0
    %768 = vmatprep.subr.bf16.mxu0 0
    %769 = vmatpush1.bf16.msra.mxu0 0
    %770 = vmatprep.subr.bf16.mxu0 0
    %771 = vmatpush1.bf16.msra.mxu0 0
    %772 = vmatprep.subr.bf16.mxu0 0
    %773 = vmatpush1.bf16.msra.mxu0 0
    %774 = vmatprep.subr.bf16.mxu0 0
    %775 = vmatpush1.bf16.msra.mxu0 0
    %776 = vmatprep.subr.bf16.mxu0 0
    %777 = vmatpush1.bf16.msra.mxu0 0
    %778 = vmatprep.subr.bf16.mxu0 0
    %779 = vmatpush1.bf16.msra.mxu0 0
    %780 = vmatprep.mubr.bf16.mxu0 0
    %781 = vmatmul.mubr.bf16.gmra.mrb[0].mxu0 %v747
    %v782 = vpop.f32.mrb[0].mxu0
    %v783 = vadd.f32 0.0, %v782
    %v784 = vpop.f32.mrb[0].mxu0
    %v785 = vpop.f32.mrb[0].mxu0
    %v786 = vpop.f32.mrb[0].mxu0
    %787 = vdwg.mxu0
    %v788 = vadd.f32 %v242, %v783
    %v789 = vxor.u32 %v788, 2147483648
    %v790 = vmul.f32 %v789, 1.442695
    %v791 = vpow.pop %v790
    %v792 = vadd.f32 %v791, 1.0
    %v793 = vrcp.pop %v792
    %v794 = vmul.f32 1.0, %v793
    %v795 = vtanh.pop %v788
    %v796 = vmul.f32 %v794, %v734
    %798 = vrot.lane.b32.xlu0 %v795, 88
    %v799 = vpop.permute.xlu0 %798
    %v801 = vmul.f32 %v794, %v799
    %803 = vrot.lane.b32.xlu0 %v801, 20
    %v804 = vpop.permute.xlu0 %803
    %v806 = vadd.f32 %v796, %v804
    %v807 = vtanh.pop %v806
    %809 = vrot.lane.b32.xlu0 %v807, 40
    %v810 = vpop.permute.xlu0 %809
    %v812 = vmul.f32 %v794, %v810
    %814 = vrot.lane.b32.xlu0 %v812, 68
    %v815 = vpop.permute.xlu0 %814
    %817 = vst.msk [vmem:[#allocation2] sm:$0xff] %vm384, %v815
    %v818 = vld [vmem:[#allocation2] sm:$0xff]
    %v819 = vpack.c.bf16 %v818, %v818
    %820 = vmatprep.subr.bf16.mxu0 0
    %821 = vmatpush1.bf16.msra.mxu0 %v299
    %822 = vmatprep.subr.bf16.mxu0 0
    %823 = vmatpush1.bf16.msra.mxu0 %v300
    %824 = vmatprep.subr.bf16.mxu0 0
    %825 = vmatpush1.bf16.msra.mxu0 %v301
    %826 = vmatprep.subr.bf16.mxu0 0
    %827 = vmatpush1.bf16.msra.mxu0 %v302
    %828 = vmatprep.subr.bf16.mxu0 0
    %829 = vmatpush1.bf16.msra.mxu0 %v303
    %830 = vmatprep.subr.bf16.mxu0 0
    %831 = vmatpush1.bf16.msra.mxu0 %v304
    %832 = vmatprep.subr.bf16.mxu0 0
    %833 = vmatpush1.bf16.msra.mxu0 %v305
    %834 = vmatprep.subr.bf16.mxu0 0
    %835 = vmatpush1.bf16.msra.mxu0 %v306
    %836 = vmatprep.subr.bf16.mxu0 0
    %837 = vmatpush1.bf16.msra.mxu0 0
    %838 = vmatprep.subr.bf16.mxu0 0
    %839 = vmatpush1.bf16.msra.mxu0 0
    %840 = vmatprep.subr.bf16.mxu0 0
    %841 = vmatpush1.bf16.msra.mxu0 0
    %842 = vmatprep.subr.bf16.mxu0 0
    %843 = vmatpush1.bf16.msra.mxu0 0
    %844 = vmatprep.subr.bf16.mxu0 0
    %845 = vmatpush1.bf16.msra.mxu0 0
    %846 = vmatprep.subr.bf16.mxu0 0
    %847 = vmatpush1.bf16.msra.mxu0 0
    %848 = vmatprep.subr.bf16.mxu0 0
    %849 = vmatpush1.bf16.msra.mxu0 0
    %850 = vmatprep.subr.bf16.mxu0 0
    %851 = vmatpush1.bf16.msra.mxu0 0
    %852 = vmatprep.mubr.bf16.mxu0 0
    %853 = vmatmul.mubr.bf16.gmra.mrb[0].mxu0 %v819
    %v854 = vpop.f32.mrb[0].mxu0
    %v855 = vadd.f32 0.0, %v854
    %v856 = vpop.f32.mrb[0].mxu0
    %v857 = vpop.f32.mrb[0].mxu0
    %v858 = vpop.f32.mrb[0].mxu0
    %859 = vdwg.mxu0
    %v860 = vadd.f32 %v245, %v855
    %v861 = vxor.u32 %v860, 2147483648
    %v862 = vmul.f32 %v861, 1.442695
    %v863 = vpow.pop %v862
    %v864 = vadd.f32 %v863, 1.0
    %v865 = vrcp.pop %v864
    %v866 = vmul.f32 1.0, %v865
    %v867 = vtanh.pop %v860
    %v868 = vmul.f32 %v866, %v806
    %870 = vrot.lane.b32.xlu0 %v867, 88
    %v871 = vpop.permute.xlu0 %870
    %v873 = vmul.f32 %v866, %v871
    %875 = vrot.lane.b32.xlu0 %v873, 20
    %v876 = vpop.permute.xlu0 %875
    %v878 = vadd.f32 %v868, %v876
    %v879 = vtanh.pop %v878
    %881 = vrot.lane.b32.xlu0 %v879, 40
    %v882 = vpop.permute.xlu0 %881
    %v884 = vmul.f32 %v866, %v882
    %886 = vrot.lane.b32.xlu0 %v884, 68
    %v887 = vpop.permute.xlu0 %886
    %889 = vst.msk [vmem:[#allocation2] sm:$0xff] %vm384, %v887
    %v890 = vld [vmem:[#allocation2] sm:$0xff]
    %v891 = vld [vmem:[#allocation9] sm:$0xff]
    %v892 = vld [vmem:[#allocation9 + $0x8] sm:$0xff]
    %v893 = vld [vmem:[#allocation9 + $0x10] sm:$0xff]
    %v894 = vld [vmem:[#allocation9 + $0x18] sm:$0xff]
    %v895 = vld [vmem:[#allocation9 + $0x20] sm:$0xff]
    %v896 = vld [vmem:[#allocation9 + $0x28] sm:$0xff]
    %v897 = vld [vmem:[#allocation9 + $0x30] sm:$0xff]
    %v898 = vld [vmem:[#allocation9 + $0x38] sm:$0xff]
    %v899 = vld [vmem:[#allocation9 + $0x40] sm:$0xff]
    %v900 = vld [vmem:[#allocation9 + $0x48] sm:$0xff]
    %v901 = vld [vmem:[#allocation9 + $0x50] sm:$0xff]
    %v902 = vld [vmem:[#allocation9 + $0x58] sm:$0xff]
    %v903 = vld [vmem:[#allocation9 + $0x60] sm:$0xff]
    %v904 = vld [vmem:[#allocation9 + $0x68] sm:$0xff]
    %v905 = vld [vmem:[#allocation9 + $0x70] sm:$0xff]
    %v906 = vld [vmem:[#allocation9 + $0x78] sm:$0xff]
    %v907 = vld [vmem:[%s5] sm:$0x1]
    %v909 = vlaneseq
    %v910 = vshrl.u32 %v909, 7
    %v911 = vsub.s32 0, %v910
    %v912 = vrot.slane %v907, %v911
    %914 = vmatprep.subr.mxu0 0.0
    %915 = vmatpush1.msra.mxu0 %v891
    %916 = vmatprep.subr.mxu0 0.0
    %917 = vmatpush1.msra.mxu0 %v892
    %918 = vmatprep.subr.mxu0 0.0
    %919 = vmatpush1.msra.mxu0 %v893
    %920 = vmatprep.subr.mxu0 0.0
    %921 = vmatpush1.msra.mxu0 %v894
    %922 = vmatprep.subr.mxu0 0.0
    %923 = vmatpush1.msra.mxu0 %v895
    %924 = vmatprep.subr.mxu0 0.0
    %925 = vmatpush1.msra.mxu0 %v896
    %926 = vmatprep.subr.mxu0 0.0
    %927 = vmatpush1.msra.mxu0 %v897
    %928 = vmatprep.subr.mxu0 0.0
    %929 = vmatpush1.msra.mxu0 %v898
    %930 = vmatprep.subr.mxu0 0.0
    %931 = vmatpush1.msra.mxu0 %v899
    %932 = vmatprep.subr.mxu0 0.0
    %933 = vmatpush1.msra.mxu0 %v900
    %934 = vmatprep.subr.mxu0 0.0
    %935 = vmatpush1.msra.mxu0 %v901
    %936 = vmatprep.subr.mxu0 0.0
    %937 = vmatpush1.msra.mxu0 %v902
    %938 = vmatprep.subr.mxu0 0.0
    %939 = vmatpush1.msra.mxu0 %v903
    %940 = vmatprep.subr.mxu0 0.0
    %941 = vmatpush1.msra.mxu0 %v904
    %942 = vmatprep.subr.mxu0 0.0
    %943 = vmatpush1.msra.mxu0 %v905
    %944 = vmatprep.subr.mxu0 0.0
    %945 = vmatpush1.msra.mxu0 %v906
    %946 = vmatprep.subr.mxu0 0.0
    %947 = vmatpush1.msra.mxu0 0.0
    %948 = vmatprep.subr.mxu0 0.0
    %949 = vmatpush1.msra.mxu0 0.0
    %950 = vmatprep.subr.mxu0 0.0
    %951 = vmatpush1.msra.mxu0 0.0
    %952 = vmatprep.subr.mxu0 0.0
    %953 = vmatpush1.msra.mxu0 0.0
    %954 = vmatprep.subr.mxu0 0.0
    %955 = vmatpush1.msra.mxu0 0.0
    %956 = vmatprep.subr.mxu0 0.0
    %957 = vmatpush1.msra.mxu0 0.0
    %958 = vmatprep.subr.mxu0 0.0
    %959 = vmatpush1.msra.mxu0 0.0
    %960 = vmatprep.subr.mxu0 0.0
    %961 = vmatpush1.msra.mxu0 0.0
    %962 = vmatprep.subr.mxu0 0.0
    %963 = vmatpush1.msra.mxu0 0.0
    %964 = vmatprep.subr.mxu0 0.0
    %965 = vmatpush1.msra.mxu0 0.0
    %966 = vmatprep.subr.mxu0 0.0
    %967 = vmatpush1.msra.mxu0 0.0
    %968 = vmatprep.subr.mxu0 0.0
    %969 = vmatpush1.msra.mxu0 0.0
    %970 = vmatprep.subr.mxu0 0.0
    %971 = vmatpush1.msra.mxu0 0.0
    %972 = vmatprep.subr.mxu0 0.0
    %973 = vmatpush1.msra.mxu0 0.0
    %974 = vmatprep.subr.mxu0 0.0
    %975 = vmatpush1.msra.mxu0 0.0
    %976 = vmatprep.subr.mxu0 0.0
    %977 = vmatpush1.msra.mxu0 0.0
    %978 = vmatprep.mubr.f32.mxu0 0.0
    %979 = vmatmul.mubr.f32.gmra.mrb[0].mxu0 %v890
    %v980 = vpop.f32.mrb[0].mxu0
    %v981 = vadd.f32 %v912, %v980
    %v982 = vpop.f32.mrb[0].mxu0
    %983 = vdwg.mxu0
    %984 = vst [vmem:[#allocation11] sm:$0xff] %v981
    // Predicated region
    $region42: #{tpu_custom_call.1} parent=1 // pred_check
      _
    $region43: #{tpu_custom_call.1} parent=1 // pred_check_branch
      %986 = sbr.rel (0) target = $region45
    $region44: #{tpu_custom_call.1} parent=1 // pred_region
      %s988 = ssub.s32 128, 128
      %989 = vsyncadd [#allocation5], %s988
      %s991 = sshll.u32 [#allocation11], 4
      %s992 = int_to_ptr.vmem [resolvable:$true] %s991
      %994 = dma.vmem_to_hbm [thread:$0]  %s992, 128, %s6, [#allocation5]
    $region45: #{tpu_custom_call.1} parent=1 // pred_fallthru
      _
    // Predicated region
    $region46: #{tpu_custom_call.1} parent=1 // pred_check
      _
    $region47: #{tpu_custom_call.1} parent=1 // pred_check_branch
      %996 = sbr.rel (0) target = $region49
    $region48: #{tpu_custom_call.1} parent=1 // pred_region
      %997 = dma.done [#allocation5], 128
    $region49: #{tpu_custom_call.1} parent=1 // pred_fallthru
      _
    %998 = vsyncpa [#allocation4], 1
    %999 = vsyncpa [#allocation7], 1
    %1000 = vsyncpa [#allocation10], 1
    %1001 = vsyncpa [#allocation5], 1

</llo_original>
